<compile_context>
chip_gen: v7x
topology: tpu7x:2x2x1
jax: 0.10.0
libtpu: 0.0.40
codegen_flags: <defaults>
</compile_context>

<pallas_src>
import jax
import jax.numpy as jnp
from jax.experimental import pallas as pl
from jax.experimental.pallas import tpu as pltpu

LAYERS = [2, 20, 20, 20, 20, 20, 20, 1]
H = LAYERS[1]              # 20 hidden units
H_PAD = 24                 # pad hidden width 20 -> 24 (multiple of 8 f32 sublanes)
N_MID = len(LAYERS) - 3    # 5 identical (20, 20) hidden layers
CHUNK = 512                # lanes per in-kernel sub-chunk: h is (24, 512) f32 = 12 vregs
TM_MAX = 2048              # max per-grid-step batch tile (lane extent); multiple of CHUNK


def mlp_kernel(x_ref, w0_ref, b0_ref, ws_ref, bs_ref, wo_ref, bo_ref, o_ref):
    """Full MLP forward for one tile of TM batch columns (batch on lanes).

    The TM-wide tile is processed in CHUNK-lane sub-chunks so the working set
    stays well under the 64-vreg file even at TM = 2048.
    """
    w0 = w0_ref[...]      # (H_PAD, 2)
    b0 = b0_ref[...]      # (H_PAD, 1)
    wo = wo_ref[...]      # (H_PAD, 1) output weights, packed as a column
    bo = bo_ref[...]      # (1, 1)
    tm = o_ref.shape[1]

    for c in range(tm // CHUNK):           # static, fully unrolled
        sl = pl.ds(c * CHUNK, CHUNK)
        x = x_ref[:, sl]                   # (2, CHUNK)

        # Layer 0: contraction depth is only 2 -> VPU outer-product form,
        # no MXU round trip.
        h = jnp.tanh(w0[:, 0:1] * x[0:1, :] + w0[:, 1:2] * x[1:2, :] + b0)
        # TODO(synk): tanh assumed to lower to a native EUP op; if the bundle dump
        # shows a VPU polynomial, an exp-based tanh (EUP exp + approx reciprocal)
        # would be the higher-leverage change.

        # Layers 1..5: 20x20 (zero-padded to 24x24) matmuls on the MXU, unrolled.
        # TODO(synk): optionally feed bf16 operands to the MXU (f32 matmuls are
        # multi-pass); kept f32 to preserve the 1e-5 match with the reference.
        for i in range(N_MID):
            h = jnp.tanh(
                jnp.dot(ws_ref[i], h, preferred_element_type=jnp.float32)
                + bs_ref[i]
            )

        # Output layer: VPU multiply + sublane (XLU) reduce instead of pushing
        # the whole h tile through the MXU again just to produce one row.
        o = jnp.sum(wo * h, axis=0, keepdims=True) + bo          # (1, CHUNK)
        o_ref[:, sl] = o.astype(o_ref.dtype)


def init_params(key, layers):
    """Deterministic PyTorch-style Linear init: U(-1/sqrt(fan_in), 1/sqrt(fan_in)).

    Weights kept in PyTorch layout (out_features, in_features), bias (out_features,).
    """
    params = []
    for i in range(len(layers) - 1):
        fan_in, fan_out = layers[i], layers[i + 1]
        key, kw, kb = jax.random.split(key, 3)
        bound = 1.0 / jnp.sqrt(jnp.float32(fan_in))
        w = jax.random.uniform(kw, (fan_out, fan_in), jnp.float32, -bound, bound)
        b = jax.random.uniform(kb, (fan_out,), jnp.float32, -bound, bound)
        params.append((w, b))
    return params


def pack_params(params):
    """Zero-pad hidden width 20 -> 24, stack the five hidden layers, and store
    the output weights as a (H_PAD, 1) column for the VPU/XLU output layer."""
    w0, b0 = params[0]
    w0p = jnp.zeros((H_PAD, LAYERS[0]), jnp.float32).at[:H, :].set(w0)
    b0p = jnp.zeros((H_PAD, 1), jnp.float32).at[:H, 0].set(b0)

    ws = jnp.zeros((N_MID, H_PAD, H_PAD), jnp.float32)
    bs = jnp.zeros((N_MID, H_PAD, 1), jnp.float32)
    for i in range(N_MID):
        w, b = params[1 + i]
        ws = ws.at[i, :H, :H].set(w)
        bs = bs.at[i, :H, 0].set(b)

    wo, bo = params[-1]
    wop = jnp.zeros((H_PAD, 1), jnp.float32).at[:H, 0].set(wo[0])
    bop = bo.reshape(1, 1).astype(jnp.float32)
    return (w0p, b0p, ws, bs, wop, bop)


def _choose_tm(n):
    """Large tile to amortize grid-step overhead, but guarantee >= 2 grid steps
    once n is big enough so v7x can shard the parallel axis across its 2 TCs."""
    if n <= 2 * CHUNK:
        return max(CHUNK, pl.cdiv(n, CHUNK) * CHUNK)     # single step, tiny N
    half = pl.cdiv(n, 2)
    return min(TM_MAX, pl.cdiv(half, CHUNK) * CHUNK)     # multiple of CHUNK


@jax.jit
def dnn_forward(x, kparams):
    w0p, b0p, ws, bs, wop, bop = kparams
    n, din = x.shape
    assert din == LAYERS[0]
    tm = _choose_tm(n)
    n_pad = pl.cdiv(n, tm) * tm
    # Batch on the lane (last) axis; pad with zeros via jnp.pad so XLA can fuse it.
    xt = jnp.pad(x.astype(jnp.float32).T, ((0, 0), (0, n_pad - n)))

    grid = (n_pad // tm,)
    out = pl.pallas_call(
        mlp_kernel,
        out_shape=jax.ShapeDtypeStruct((1, n_pad), jnp.float32),
        grid_spec=pltpu.PrefetchScalarGridSpec(
            num_scalar_prefetch=0,
            grid=grid,
            in_specs=[
                pl.BlockSpec((din, tm), lambda i: (0, i)),                 # x tile
                pl.BlockSpec((H_PAD, din), lambda i: (0, 0)),              # w0
                pl.BlockSpec((H_PAD, 1), lambda i: (0, 0)),                # b0
                pl.BlockSpec((N_MID, H_PAD, H_PAD), lambda i: (0, 0, 0)),  # hidden W stack
                pl.BlockSpec((N_MID, H_PAD, 1), lambda i: (0, 0, 0)),      # hidden b stack
                pl.BlockSpec((H_PAD, 1), lambda i: (0, 0)),                # w_out column
                pl.BlockSpec((1, 1), lambda i: (0, 0)),                    # b_out
            ],
            out_specs=pl.BlockSpec((1, tm), lambda i: (0, i)),
        ),
        compiler_params=pltpu.CompilerParams(
            dimension_semantics=("parallel",),
        ),
    )(xt, w0p, b0p, ws, bs, wop, bop)
    return out[:, :n].T  # (n, 1)


def reference_forward(x, params):
    h = x.astype(jnp.float32)
    for i, (w, b) in enumerate(params):
        h = h @ w.T + b
        if i < len(params) - 1:
            h = jnp.tanh(h)
    return h


if __name__ == "__main__":
    key = jax.random.PRNGKey(0)
    kx1, kx2, kp = jax.random.split(key, 3)

    params = init_params(kp, LAYERS)
    kparams = pack_params(params)

    # Case 1: small input (single grid step, single sub-chunk).
    N1 = 8
    x1 = jax.random.uniform(kx1, (N1, 2), jnp.float32, -1.0, 1.0)
    out1 = jax.block_until_ready(dnn_forward(x1, kparams))
    ref1 = reference_forward(x1, params)
    assert out1.shape == (N1, 1)
    assert jnp.allclose(out1, ref1, atol=1e-5, rtol=1e-5), (out1, ref1)

    # Case 2: N larger than one tile and not a multiple of it — exercises the
    # index_map, batch padding, multiple grid steps and the out[:, :n] slice.
    N2 = 2600
    x2 = jax.random.uniform(kx2, (N2, 2), jnp.float32, -1.0, 1.0)
    out2 = jax.block_until_ready(dnn_forward(x2, kparams))
    ref2 = reference_forward(x2, params)
    assert out2.shape == (N2, 1)
    assert jnp.allclose(out2, ref2, atol=1e-5, rtol=1e-5)

    print("KERNEL_OK")
</pallas_src>

<mosaic_0001>
module attributes {stable_mosaic.version = 11 : i64} {
  func.func @mlp_kernel(%arg0: i32, %arg1: memref<2x512xf32, #tpu.memory_space<vmem>>, %arg2: memref<24x2xf32, #tpu.memory_space<vmem>>, %arg3: memref<24x1xf32, #tpu.memory_space<vmem>>, %arg4: memref<5x24x24xf32, #tpu.memory_space<vmem>>, %arg5: memref<5x24x1xf32, #tpu.memory_space<vmem>>, %arg6: memref<24x1xf32, #tpu.memory_space<vmem>>, %arg7: memref<1x1xf32, #tpu.memory_space<vmem>>, %arg8: memref<1x512xf32, #tpu.memory_space<vmem>>) attributes {dimension_semantics = [#tpu.dimension_semantics<parallel>], iteration_bounds = array<i64: 1>, scalar_prefetch = 0 : i64, scratch_operands = 0 : i64, tpu.core_type = #tpu.core_type<tc>, window_params = [{transform_indices = @transform_0, window_bounds = array<i64: 2, 512>}, {pipeline_mode = #tpu.pipeline_mode<synchronous>, transform_indices = @transform_1, window_bounds = array<i64: 24, 2>}, {pipeline_mode = #tpu.pipeline_mode<synchronous>, transform_indices = @transform_2, window_bounds = array<i64: 24, 1>}, {pipeline_mode = #tpu.pipeline_mode<synchronous>, transform_indices = @transform_3, window_bounds = array<i64: 5, 24, 24>}, {pipeline_mode = #tpu.pipeline_mode<synchronous>, transform_indices = @transform_4, window_bounds = array<i64: 5, 24, 1>}, {pipeline_mode = #tpu.pipeline_mode<synchronous>, transform_indices = @transform_5, window_bounds = array<i64: 24, 1>}, {pipeline_mode = #tpu.pipeline_mode<synchronous>, transform_indices = @transform_6, window_bounds = array<i64: 1, 1>}, {transform_indices = @transform_7, window_bounds = array<i64: 1, 512>}]} {
    %c0 = arith.constant 0 : index
    %c0_0 = arith.constant 0 : index
    %0 = vector.load %arg2[%c0, %c0_0] : memref<24x2xf32, #tpu.memory_space<vmem>>, vector<24x2xf32>
    %c0_1 = arith.constant 0 : index
    %c0_2 = arith.constant 0 : index
    %1 = vector.load %arg3[%c0_1, %c0_2] : memref<24x1xf32, #tpu.memory_space<vmem>>, vector<24x1xf32>
    %c0_3 = arith.constant 0 : index
    %c0_4 = arith.constant 0 : index
    %2 = vector.load %arg6[%c0_3, %c0_4] : memref<24x1xf32, #tpu.memory_space<vmem>>, vector<24x1xf32>
    %c0_5 = arith.constant 0 : index
    %c0_6 = arith.constant 0 : index
    %3 = vector.load %arg7[%c0_5, %c0_6] : memref<1x1xf32, #tpu.memory_space<vmem>>, vector<1x1xf32>
    %c0_7 = arith.constant 0 : index
    %c0_8 = arith.constant 0 : index
    %4 = vector.load %arg1[%c0_7, %c0_8] : memref<2x512xf32, #tpu.memory_space<vmem>>, vector<2x512xf32>
    %5 = vector.extract_strided_slice %0 {offsets = [0, 0], sizes = [24, 1], strides = [1, 1]} : vector<24x2xf32> to vector<24x1xf32>
    %6 = vector.extract_strided_slice %4 {offsets = [0, 0], sizes = [1, 512], strides = [1, 1]} : vector<2x512xf32> to vector<1x512xf32>
    %7 = vector.broadcast %5 : vector<24x1xf32> to vector<24x512xf32>
    %8 = vector.broadcast %6 : vector<1x512xf32> to vector<24x512xf32>
    %9 = arith.mulf %7, %8 : vector<24x512xf32>
    %10 = vector.extract_strided_slice %0 {offsets = [0, 1], sizes = [24, 1], strides = [1, 1]} : vector<24x2xf32> to vector<24x1xf32>
    %11 = vector.extract_strided_slice %4 {offsets = [1, 0], sizes = [1, 512], strides = [1, 1]} : vector<2x512xf32> to vector<1x512xf32>
    %12 = vector.broadcast %10 : vector<24x1xf32> to vector<24x512xf32>
    %13 = vector.broadcast %11 : vector<1x512xf32> to vector<24x512xf32>
    %14 = arith.mulf %12, %13 : vector<24x512xf32>
    %15 = arith.addf %9, %14 : vector<24x512xf32>
    %16 = vector.broadcast %1 : vector<24x1xf32> to vector<24x512xf32>
    %17 = arith.addf %15, %16 : vector<24x512xf32>
    %18 = math.tanh %17 : vector<24x512xf32>
    %c0_9 = arith.constant 0 : index
    %c0_10 = arith.constant 0 : index
    %c0_11 = arith.constant 0 : index
    %19 = vector.load %arg4[%c0_9, %c0_10, %c0_11] : memref<5x24x24xf32, #tpu.memory_space<vmem>>, vector<1x24x24xf32>
    %20 = vector.shape_cast %19 : vector<1x24x24xf32> to vector<24x24xf32>
    %cst = arith.constant dense<0.000000e+00> : vector<24x512xf32>
    %21 = tpu.matmul %20, %18, %cst {dimension_numbers = #tpu.dot_dimension_numbers<[1], [0], [0], [1], [0, 0, 1, 1], [], []>} : vector<24x24xf32>, vector<24x512xf32>, vector<24x512xf32> -> vector<24x512xf32>
    %c0_12 = arith.constant 0 : index
    %c0_13 = arith.constant 0 : index
    %c0_14 = arith.constant 0 : index
    %22 = vector.load %arg5[%c0_12, %c0_13, %c0_14] : memref<5x24x1xf32, #tpu.memory_space<vmem>>, vector<1x24x1xf32>
    %23 = vector.shape_cast %22 : vector<1x24x1xf32> to vector<24x1xf32>
    %24 = vector.broadcast %23 : vector<24x1xf32> to vector<24x512xf32>
    %25 = arith.addf %21, %24 : vector<24x512xf32>
    %26 = math.tanh %25 : vector<24x512xf32>
    %c1 = arith.constant 1 : index
    %c0_15 = arith.constant 0 : index
    %c0_16 = arith.constant 0 : index
    %27 = vector.load %arg4[%c1, %c0_15, %c0_16] : memref<5x24x24xf32, #tpu.memory_space<vmem>>, vector<1x24x24xf32>
    %28 = vector.shape_cast %27 : vector<1x24x24xf32> to vector<24x24xf32>
    %cst_17 = arith.constant dense<0.000000e+00> : vector<24x512xf32>
    %29 = tpu.matmul %28, %26, %cst_17 {dimension_numbers = #tpu.dot_dimension_numbers<[1], [0], [0], [1], [0, 0, 1, 1], [], []>} : vector<24x24xf32>, vector<24x512xf32>, vector<24x512xf32> -> vector<24x512xf32>
    %c1_18 = arith.constant 1 : index
    %c0_19 = arith.constant 0 : index
    %c0_20 = arith.constant 0 : index
    %30 = vector.load %arg5[%c1_18, %c0_19, %c0_20] : memref<5x24x1xf32, #tpu.memory_space<vmem>>, vector<1x24x1xf32>
    %31 = vector.shape_cast %30 : vector<1x24x1xf32> to vector<24x1xf32>
    %32 = vector.broadcast %31 : vector<24x1xf32> to vector<24x512xf32>
    %33 = arith.addf %29, %32 : vector<24x512xf32>
    %34 = math.tanh %33 : vector<24x512xf32>
    %c2 = arith.constant 2 : index
    %c0_21 = arith.constant 0 : index
    %c0_22 = arith.constant 0 : index
    %35 = vector.load %arg4[%c2, %c0_21, %c0_22] : memref<5x24x24xf32, #tpu.memory_space<vmem>>, vector<1x24x24xf32>
    %36 = vector.shape_cast %35 : vector<1x24x24xf32> to vector<24x24xf32>
    %cst_23 = arith.constant dense<0.000000e+00> : vector<24x512xf32>
    %37 = tpu.matmul %36, %34, %cst_23 {dimension_numbers = #tpu.dot_dimension_numbers<[1], [0], [0], [1], [0, 0, 1, 1], [], []>} : vector<24x24xf32>, vector<24x512xf32>, vector<24x512xf32> -> vector<24x512xf32>
    %c2_24 = arith.constant 2 : index
    %c0_25 = arith.constant 0 : index
    %c0_26 = arith.constant 0 : index
    %38 = vector.load %arg5[%c2_24, %c0_25, %c0_26] : memref<5x24x1xf32, #tpu.memory_space<vmem>>, vector<1x24x1xf32>
    %39 = vector.shape_cast %38 : vector<1x24x1xf32> to vector<24x1xf32>
    %40 = vector.broadcast %39 : vector<24x1xf32> to vector<24x512xf32>
    %41 = arith.addf %37, %40 : vector<24x512xf32>
    %42 = math.tanh %41 : vector<24x512xf32>
    %c3 = arith.constant 3 : index
    %c0_27 = arith.constant 0 : index
    %c0_28 = arith.constant 0 : index
    %43 = vector.load %arg4[%c3, %c0_27, %c0_28] : memref<5x24x24xf32, #tpu.memory_space<vmem>>, vector<1x24x24xf32>
    %44 = vector.shape_cast %43 : vector<1x24x24xf32> to vector<24x24xf32>
    %cst_29 = arith.constant dense<0.000000e+00> : vector<24x512xf32>
    %45 = tpu.matmul %44, %42, %cst_29 {dimension_numbers = #tpu.dot_dimension_numbers<[1], [0], [0], [1], [0, 0, 1, 1], [], []>} : vector<24x24xf32>, vector<24x512xf32>, vector<24x512xf32> -> vector<24x512xf32>
    %c3_30 = arith.constant 3 : index
    %c0_31 = arith.constant 0 : index
    %c0_32 = arith.constant 0 : index
    %46 = vector.load %arg5[%c3_30, %c0_31, %c0_32] : memref<5x24x1xf32, #tpu.memory_space<vmem>>, vector<1x24x1xf32>
    %47 = vector.shape_cast %46 : vector<1x24x1xf32> to vector<24x1xf32>
    %48 = vector.broadcast %47 : vector<24x1xf32> to vector<24x512xf32>
    %49 = arith.addf %45, %48 : vector<24x512xf32>
    %50 = math.tanh %49 : vector<24x512xf32>
    %c4 = arith.constant 4 : index
    %c0_33 = arith.constant 0 : index
    %c0_34 = arith.constant 0 : index
    %51 = vector.load %arg4[%c4, %c0_33, %c0_34] : memref<5x24x24xf32, #tpu.memory_space<vmem>>, vector<1x24x24xf32>
    %52 = vector.shape_cast %51 : vector<1x24x24xf32> to vector<24x24xf32>
    %cst_35 = arith.constant dense<0.000000e+00> : vector<24x512xf32>
    %53 = tpu.matmul %52, %50, %cst_35 {dimension_numbers = #tpu.dot_dimension_numbers<[1], [0], [0], [1], [0, 0, 1, 1], [], []>} : vector<24x24xf32>, vector<24x512xf32>, vector<24x512xf32> -> vector<24x512xf32>
    %c4_36 = arith.constant 4 : index
    %c0_37 = arith.constant 0 : index
    %c0_38 = arith.constant 0 : index
    %54 = vector.load %arg5[%c4_36, %c0_37, %c0_38] : memref<5x24x1xf32, #tpu.memory_space<vmem>>, vector<1x24x1xf32>
    %55 = vector.shape_cast %54 : vector<1x24x1xf32> to vector<24x1xf32>
    %56 = vector.broadcast %55 : vector<24x1xf32> to vector<24x512xf32>
    %57 = arith.addf %53, %56 : vector<24x512xf32>
    %58 = math.tanh %57 : vector<24x512xf32>
    %59 = vector.broadcast %2 : vector<24x1xf32> to vector<24x512xf32>
    %60 = arith.mulf %59, %58 : vector<24x512xf32>
    %cst_39 = arith.constant dense<0.000000e+00> : vector<512xf32>
    %61 = vector.multi_reduction <add>, %60, %cst_39 [0] : vector<24x512xf32> to vector<512xf32>
    %62 = vector.shape_cast %61 : vector<512xf32> to vector<1x512xf32>
    %63 = vector.broadcast %3 : vector<1x1xf32> to vector<1x512xf32>
    %64 = arith.addf %62, %63 : vector<1x512xf32>
    %c0_40 = arith.constant 0 : index
    %c0_41 = arith.constant 0 : index
    %65 = vector.load %arg8[%c0_40, %c0_41] : memref<1x512xf32, #tpu.memory_space<vmem>>, vector<1x512xf32>
    tpu.vector_store %arg8[%c0_40, %c0_41], %64 {strides = array<i32>} : memref<1x512xf32, #tpu.memory_space<vmem>>, vector<1x512xf32>,
    return
  }
  func.func @transform_0(%arg0: i32) -> (i32, i32) {
    %c0_i32 = arith.constant 0 : i32
    %c0_i32_0 = arith.constant 0 : i32
    return %c0_i32, %arg0 : i32, i32
  }
  func.func @transform_1(%arg0: i32) -> (i32, i32) {
    %c0_i32 = arith.constant 0 : i32
    %c0_i32_0 = arith.constant 0 : i32
    %c0_i32_1 = arith.constant 0 : i32
    return %c0_i32, %c0_i32_0 : i32, i32
  }
  func.func @transform_2(%arg0: i32) -> (i32, i32) {
    %c0_i32 = arith.constant 0 : i32
    %c0_i32_0 = arith.constant 0 : i32
    %c0_i32_1 = arith.constant 0 : i32
    return %c0_i32, %c0_i32_0 : i32, i32
  }
  func.func @transform_3(%arg0: i32) -> (i32, i32, i32) {
    %c0_i32 = arith.constant 0 : i32
    %c0_i32_0 = arith.constant 0 : i32
    %c0_i32_1 = arith.constant 0 : i32
    %c0_i32_2 = arith.constant 0 : i32
    return %c0_i32, %c0_i32_0, %c0_i32_1 : i32, i32, i32
  }
  func.func @transform_4(%arg0: i32) -> (i32, i32, i32) {
    %c0_i32 = arith.constant 0 : i32
    %c0_i32_0 = arith.constant 0 : i32
    %c0_i32_1 = arith.constant 0 : i32
    %c0_i32_2 = arith.constant 0 : i32
    return %c0_i32, %c0_i32_0, %c0_i32_1 : i32, i32, i32
  }
  func.func @transform_5(%arg0: i32) -> (i32, i32) {
    %c0_i32 = arith.constant 0 : i32
    %c0_i32_0 = arith.constant 0 : i32
    %c0_i32_1 = arith.constant 0 : i32
    return %c0_i32, %c0_i32_0 : i32, i32
  }
  func.func @transform_6(%arg0: i32) -> (i32, i32) {
    %c0_i32 = arith.constant 0 : i32
    %c0_i32_0 = arith.constant 0 : i32
    %c0_i32_1 = arith.constant 0 : i32
    return %c0_i32, %c0_i32_0 : i32, i32
  }
  func.func @transform_7(%arg0: i32) -> (i32, i32) {
    %c0_i32 = arith.constant 0 : i32
    %c0_i32_0 = arith.constant 0 : i32
    return %c0_i32, %arg0 : i32, i32
  }
}

</mosaic_0001>

<llo_original>
// kernel: dnn_forward.1
$region0: #{dnn_forward.1}
  #allocation0 [shape = 'u32[]', space=smem, size = 0x4, offset = 0x4, fixed_abs, tag = 'smem constant byte address 0x4 - core index']
  #allocation1 [shape = 'u32[144,128]{1,0:T(1,128)}', space=vmem, size = 0x12000, scoped, tag = 'internal scratch']
  #allocation2 [shape = 'f32[1,1]{1,0:T(1,128)S(1)}', space=vmem, size = 0x200, scoped, tag = 'scoped memory for dnn_forward.1']
  %s0 = inlined_call_operand.vmem [shape: f32[2,512], index: 0, kind: input, shape index: {}]
  %s1 = inlined_call_operand.vmem [shape: f32[24,2], index: 1, kind: input, shape index: {}]
  %s2 = inlined_call_operand.vmem [shape: f32[24,1], index: 2, kind: input, shape index: {}]
  %s3 = inlined_call_operand.vmem [shape: f32[5,24,24], index: 3, kind: input, shape index: {}]
  %s4 = inlined_call_operand.vmem [shape: f32[5,24,1], index: 4, kind: input, shape index: {}]
  %s5 = inlined_call_operand.vmem [shape: f32[24,1], index: 5, kind: input, shape index: {}]
  %s6 = inlined_call_operand.<no memory space> [shape: f32[1,1], index: 6, kind: input, shape index: {}]
  %s7 = inlined_call_operand.vmem [shape: f32[1,512], index: 7, kind: output, shape index: {}]
  %s8 = sld [smem:[#allocation0]]
  $region38: #{dnn_forward.1} parent=0
    _
  %s10 = ssub.s32 1, %s8
  %s11 = scalar_select 0, %s10, %s8
  %v12 = vstv %s6
  %13 = vst [vmem:[#allocation2] sm:$0x1] %v12
  // Predicated region
  $region2: #{dnn_forward.1} parent=0 // pred_check
    _
  $region3: #{dnn_forward.1} parent=0 // pred_check_branch
    %15 = sbr.rel (0) target = $region5
  $region4: #{dnn_forward.1} parent=0 // pred_region
    _
  $region5: #{dnn_forward.1} parent=0 // pred_fallthru
    _
  // Predicated region
  $region6: #{dnn_forward.1} parent=0 // pred_check
    _
  $region7: #{dnn_forward.1} parent=0 // pred_check_branch
    %17 = sbr.rel (0) target = $region9
  $region8: #{dnn_forward.1} parent=0 // pred_region
    _
  $region9: #{dnn_forward.1} parent=0 // pred_fallthru
    _
  // Predicated region
  $region10: #{dnn_forward.1} parent=0 // pred_check
    _
  $region11: #{dnn_forward.1} parent=0 // pred_check_branch
    %19 = sbr.rel (0) target = $region13
  $region12: #{dnn_forward.1} parent=0 // pred_region
    _
  $region13: #{dnn_forward.1} parent=0 // pred_fallthru
    _
  // Predicated region
  $region14: #{dnn_forward.1} parent=0 // pred_check
    _
  $region15: #{dnn_forward.1} parent=0 // pred_check_branch
    %21 = sbr.rel (0) target = $region17
  $region16: #{dnn_forward.1} parent=0 // pred_region
    _
  $region17: #{dnn_forward.1} parent=0 // pred_fallthru
    _
  // Predicated region
  $region18: #{dnn_forward.1} parent=0 // pred_check
    _
  $region19: #{dnn_forward.1} parent=0 // pred_check_branch
    %23 = sbr.rel (0) target = $region21
  $region20: #{dnn_forward.1} parent=0 // pred_region
    _
  $region21: #{dnn_forward.1} parent=0 // pred_fallthru
    _
  // Predicated region
  $region22: #{dnn_forward.1} parent=0 // pred_check
    _
  $region23: #{dnn_forward.1} parent=0 // pred_check_branch
    %25 = sbr.rel (0) target = $region25
  $region24: #{dnn_forward.1} parent=0 // pred_region
    _
  $region25: #{dnn_forward.1} parent=0 // pred_fallthru
    _
  // Predicated region
  $region26: #{dnn_forward.1} parent=0 // pred_check
    _
  $region27: #{dnn_forward.1} parent=0 // pred_check_branch
    %27 = sbr.rel (0) target = $region29
  $region28: #{dnn_forward.1} parent=0 // pred_region
    _
  $region29: #{dnn_forward.1} parent=0 // pred_fallthru
    _
  %v28 = vld [vmem:[%s1] sm:$0xff]
  %v29 = vld [vmem:[%s1 + $0x8] sm:$0xff]
  %v30 = vld [vmem:[%s1 + $0x10] sm:$0xff]
  %v31 = vld [vmem:[%s2] sm:$0xff]
  %v32 = vld [vmem:[%s2 + $0x8] sm:$0xff]
  %v33 = vld [vmem:[%s2 + $0x10] sm:$0xff]
  %v34 = vld [vmem:[%s5] sm:$0xff]
  %v35 = vld [vmem:[%s5 + $0x8] sm:$0xff]
  %v36 = vld [vmem:[%s5 + $0x10] sm:$0xff]
  %v37 = vld [vmem:[#allocation2] sm:$0x1]
  %v38 = vld [vmem:[%s0] sm:$0xff]
  %40 = vset.pattern.permute.xlu0 0
  %41 = vperm.xlu0 %40, %v28
  %v42 = vpop.permute.xlu0 %41
  %45 = vset.pattern.permute.xlu0 0
  %46 = vperm.xlu0 %45, %v29
  %v47 = vpop.permute.xlu0 %46
  %50 = vset.pattern.permute.xlu0 0
  %51 = vperm.xlu0 %50, %v30
  %v52 = vpop.permute.xlu0 %51
  %v55 = vlaneseq
  %v56 = vshrl.u32 %v55, 7
  %v57 = vsub.s32 0, %v56
  %v58 = vrot.slane %v38, %v57
  %v59 = vlaneseq
  %v60 = vshrl.u32 %v59, 7
  %v61 = vsub.s32 2, %v60
  %v62 = vrot.slane %v38, %v61
  %v63 = vlaneseq
  %v64 = vshrl.u32 %v63, 7
  %v65 = vsub.s32 4, %v64
  %v66 = vrot.slane %v38, %v65
  %v67 = vlaneseq
  %v68 = vshrl.u32 %v67, 7
  %v69 = vsub.s32 6, %v68
  %v70 = vrot.slane %v38, %v69
  %v75 = vlaneseq
  %v76 = vshrl.u32 %v75, 7
  %v77 = vsub.s32 0, %v76
  %v78 = vrot.slane %v58, %v77
  %v79 = vlaneseq
  %v80 = vshrl.u32 %v79, 7
  %v81 = vsub.s32 0, %v80
  %v82 = vrot.slane %v62, %v81
  %v83 = vlaneseq
  %v84 = vshrl.u32 %v83, 7
  %v85 = vsub.s32 0, %v84
  %v86 = vrot.slane %v66, %v85
  %v87 = vlaneseq
  %v88 = vshrl.u32 %v87, 7
  %v89 = vsub.s32 0, %v88
  %v90 = vrot.slane %v70, %v89
  %v91 = vmul.f32 %v42, %v78
  %v92 = vmul.f32 %v42, %v82
  %v93 = vmul.f32 %v42, %v86
  %v94 = vmul.f32 %v42, %v90
  %v95 = vmul.f32 %v47, %v78
  %v96 = vmul.f32 %v47, %v82
  %v97 = vmul.f32 %v47, %v86
  %v98 = vmul.f32 %v47, %v90
  %v99 = vmul.f32 %v52, %v78
  %v100 = vmul.f32 %v52, %v82
  %v101 = vmul.f32 %v52, %v86
  %v102 = vmul.f32 %v52, %v90
  %103 = vset.pattern.permute.xlu0 1
  %104 = vperm.xlu0 %103, %v28
  %v105 = vpop.permute.xlu0 %104
  %107 = vset.pattern.permute.xlu0 1
  %108 = vperm.xlu0 %107, %v29
  %v109 = vpop.permute.xlu0 %108
  %111 = vset.pattern.permute.xlu0 1
  %112 = vperm.xlu0 %111, %v30
  %v113 = vpop.permute.xlu0 %112
  %v115 = vlaneseq
  %v116 = vshrl.u32 %v115, 7
  %v117 = vsub.s32 1, %v116
  %v118 = vrot.slane %v38, %v117
  %v119 = vlaneseq
  %v120 = vshrl.u32 %v119, 7
  %v121 = vsub.s32 3, %v120
  %v122 = vrot.slane %v38, %v121
  %v123 = vlaneseq
  %v124 = vshrl.u32 %v123, 7
  %v125 = vsub.s32 5, %v124
  %v126 = vrot.slane %v38, %v125
  %v127 = vlaneseq
  %v128 = vshrl.u32 %v127, 7
  %v129 = vsub.s32 7, %v128
  %v130 = vrot.slane %v38, %v129
  %v135 = vlaneseq
  %v136 = vshrl.u32 %v135, 7
  %v137 = vsub.s32 1, %v136
  %v138 = vrot.slane %v118, %v137
  %v139 = vlaneseq
  %v140 = vshrl.u32 %v139, 7
  %v141 = vsub.s32 1, %v140
  %v142 = vrot.slane %v122, %v141
  %v143 = vlaneseq
  %v144 = vshrl.u32 %v143, 7
  %v145 = vsub.s32 1, %v144
  %v146 = vrot.slane %v126, %v145
  %v147 = vlaneseq
  %v148 = vshrl.u32 %v147, 7
  %v149 = vsub.s32 1, %v148
  %v150 = vrot.slane %v130, %v149
  %v151 = vmul.f32 %v105, %v138
  %v152 = vmul.f32 %v105, %v142
  %v153 = vmul.f32 %v105, %v146
  %v154 = vmul.f32 %v105, %v150
  %v155 = vmul.f32 %v109, %v138
  %v156 = vmul.f32 %v109, %v142
  %v157 = vmul.f32 %v109, %v146
  %v158 = vmul.f32 %v109, %v150
  %v159 = vmul.f32 %v113, %v138
  %v160 = vmul.f32 %v113, %v142
  %v161 = vmul.f32 %v113, %v146
  %v162 = vmul.f32 %v113, %v150
  %v163 = vadd.f32 %v91, %v151
  %v164 = vadd.f32 %v92, %v152
  %v165 = vadd.f32 %v93, %v153
  %v166 = vadd.f32 %v94, %v154
  %v167 = vadd.f32 %v95, %v155
  %v168 = vadd.f32 %v96, %v156
  %v169 = vadd.f32 %v97, %v157
  %v170 = vadd.f32 %v98, %v158
  %v171 = vadd.f32 %v99, %v159
  %v172 = vadd.f32 %v100, %v160
  %v173 = vadd.f32 %v101, %v161
  %v174 = vadd.f32 %v102, %v162
  %176 = vset.pattern.permute.xlu0 0
  %177 = vperm.xlu0 %176, %v31
  %v178 = vpop.permute.xlu0 %177
  %181 = vset.pattern.permute.xlu0 0
  %182 = vperm.xlu0 %181, %v32
  %v183 = vpop.permute.xlu0 %182
  %186 = vset.pattern.permute.xlu0 0
  %187 = vperm.xlu0 %186, %v33
  %v188 = vpop.permute.xlu0 %187
  %v190 = vadd.f32 %v163, %v178
  %v191 = vadd.f32 %v164, %v178
  %v192 = vadd.f32 %v165, %v178
  %v193 = vadd.f32 %v166, %v178
  %v194 = vadd.f32 %v167, %v183
  %v195 = vadd.f32 %v168, %v183
  %v196 = vadd.f32 %v169, %v183
  %v197 = vadd.f32 %v170, %v183
  %v198 = vadd.f32 %v171, %v188
  %v199 = vadd.f32 %v172, %v188
  %v200 = vadd.f32 %v173, %v188
  %v201 = vadd.f32 %v174, %v188
  %v202 = vtanh.pop %v190
  %v203 = vtanh.pop %v191
  %v204 = vtanh.pop %v192
  %v205 = vtanh.pop %v193
  %v206 = vtanh.pop %v194
  %v207 = vtanh.pop %v195
  %v208 = vtanh.pop %v196
  %v209 = vtanh.pop %v197
  %v210 = vtanh.pop %v198
  %v211 = vtanh.pop %v199
  %v212 = vtanh.pop %v200
  %v213 = vtanh.pop %v201
  %v214 = vld [vmem:[%s3] sm:$0xff]
  %v215 = vld [vmem:[%s3 + $0x8] sm:$0xff]
  %v216 = vld [vmem:[%s3 + $0x10] sm:$0xff]
  %v217 = vld [vmem:[%s4] sm:$0xff]
  %v218 = vld [vmem:[%s4 + $0x8] sm:$0xff]
  %v219 = vld [vmem:[%s4 + $0x10] sm:$0xff]
  %221 = vset.pattern.permute.xlu0 0
  %222 = vperm.xlu0 %221, %v217
  %v223 = vpop.permute.xlu0 %222
  %226 = vset.pattern.permute.xlu0 0
  %227 = vperm.xlu0 %226, %v218
  %v228 = vpop.permute.xlu0 %227
  %231 = vset.pattern.permute.xlu0 0
  %232 = vperm.xlu0 %231, %v219
  %v233 = vpop.permute.xlu0 %232
  %vm235 = vcmask 195584
  %v237 = vsel %vm235, %v214, 0
  %v240 = vsel %vm235, %v215, 0
  %v243 = vsel %vm235, %v216, 0
  %245 = vmatprep.subr.mxu0 %v203
  %246 = vmatpush1.msra.mxu0 %v202
  %247 = vmatprep.subr.mxu0 %v207
  %248 = vmatpush1.msra.mxu0 %v206
  %249 = vmatprep.subr.mxu0 %v211
  %250 = vmatpush1.msra.mxu0 %v210
  %251 = vmatprep.subr.mxu0 0.0
  %252 = vmatpush1.msra.mxu0 0.0
  %253 = vmatprep.subr.mxu0 0.0
  %254 = vmatpush1.msra.mxu0 0.0
  %255 = vmatprep.subr.mxu0 0.0
  %256 = vmatpush1.msra.mxu0 0.0
  %257 = vmatprep.subr.mxu0 0.0
  %258 = vmatpush1.msra.mxu0 0.0
  %259 = vmatprep.subr.mxu0 0.0
  %260 = vmatpush1.msra.mxu0 0.0
  %261 = vmatprep.subr.mxu0 0.0
  %262 = vmatpush1.msra.mxu0 0.0
  %263 = vmatprep.subr.mxu0 0.0
  %264 = vmatpush1.msra.mxu0 0.0
  %265 = vmatprep.subr.mxu0 0.0
  %266 = vmatpush1.msra.mxu0 0.0
  %267 = vmatprep.subr.mxu0 0.0
  %268 = vmatpush1.msra.mxu0 0.0
  %269 = vmatprep.subr.mxu0 0.0
  %270 = vmatpush1.msra.mxu0 0.0
  %271 = vmatprep.subr.mxu0 0.0
  %272 = vmatpush1.msra.mxu0 0.0
  %273 = vmatprep.subr.mxu0 0.0
  %274 = vmatpush1.msra.mxu0 0.0
  %275 = vmatprep.subr.mxu0 0.0
  %276 = vmatpush1.msra.mxu0 0.0
  %277 = vmatprep.subr.mxu0 0.0
  %278 = vmatpush1.msra.mxu0 0.0
  %279 = vmatprep.subr.mxu0 0.0
  %280 = vmatpush1.msra.mxu0 0.0
  %281 = vmatprep.subr.mxu0 0.0
  %282 = vmatpush1.msra.mxu0 0.0
  %283 = vmatprep.subr.mxu0 0.0
  %284 = vmatpush1.msra.mxu0 0.0
  %285 = vmatprep.subr.mxu0 0.0
  %286 = vmatpush1.msra.mxu0 0.0
  %287 = vmatprep.subr.mxu0 0.0
  %288 = vmatpush1.msra.mxu0 0.0
  %289 = vmatprep.subr.mxu0 0.0
  %290 = vmatpush1.msra.mxu0 0.0
  %291 = vmatprep.subr.mxu0 0.0
  %292 = vmatpush1.msra.mxu0 0.0
  %293 = vmatprep.subr.mxu0 0.0
  %294 = vmatpush1.msra.mxu0 0.0
  %295 = vmatprep.subr.mxu0 0.0
  %296 = vmatpush1.msra.mxu0 0.0
  %297 = vmatprep.subr.mxu0 0.0
  %298 = vmatpush1.msra.mxu0 0.0
  %299 = vmatprep.subr.mxu0 0.0
  %300 = vmatpush1.msra.mxu0 0.0
  %301 = vmatprep.subr.mxu0 0.0
  %302 = vmatpush1.msra.mxu0 0.0
  %303 = vmatprep.subr.mxu0 0.0
  %304 = vmatpush1.msra.mxu0 0.0
  %305 = vmatprep.subr.mxu0 0.0
  %306 = vmatpush1.msra.mxu0 0.0
  %307 = vmatprep.subr.mxu0 0.0
  %308 = vmatpush1.msra.mxu0 0.0
  %309 = vmatprep.mubr.f32.mxu0 0.0
  %310 = vmatmul.mubr.f32.gmra.mrb[0].mxu0 %v237
  %v311 = vpop.f32.mrb[0].mxu0
  %v312 = vadd.f32 %v223, %v311
  %v313 = vpop.f32.mrb[0].mxu0
  %v314 = vadd.f32 %v223, %v313
  %315 = vmatprep.mubr.f32.mxu0 0.0
  %316 = vmatmul.mubr.f32.gmra.mrb[0].mxu0 %v240
  %v317 = vpop.f32.mrb[0].mxu0
  %v318 = vadd.f32 %v228, %v317
  %v319 = vpop.f32.mrb[0].mxu0
  %v320 = vadd.f32 %v228, %v319
  %321 = vmatprep.mubr.f32.mxu0 0.0
  %322 = vmatmul.mubr.f32.gmra.mrb[0].mxu0 %v243
  %v323 = vpop.f32.mrb[0].mxu0
  %v324 = vadd.f32 %v233, %v323
  %v325 = vpop.f32.mrb[0].mxu0
  %v326 = vadd.f32 %v233, %v325
  %327 = vdwg.mxu0
  %328 = vmatprep.subr.mxu0 %v205
  %329 = vmatpush1.msra.mxu0 %v204
  %330 = vmatprep.subr.mxu0 %v209
  %331 = vmatpush1.msra.mxu0 %v208
  %332 = vmatprep.subr.mxu0 %v213
  %333 = vmatpush1.msra.mxu0 %v212
  %334 = vmatprep.subr.mxu0 0.0
  %335 = vmatpush1.msra.mxu0 0.0
  %336 = vmatprep.subr.mxu0 0.0
  %337 = vmatpush1.msra.mxu0 0.0
  %338 = vmatprep.subr.mxu0 0.0
  %339 = vmatpush1.msra.mxu0 0.0
  %340 = vmatprep.subr.mxu0 0.0
  %341 = vmatpush1.msra.mxu0 0.0
  %342 = vmatprep.subr.mxu0 0.0
  %343 = vmatpush1.msra.mxu0 0.0
  %344 = vmatprep.subr.mxu0 0.0
  %345 = vmatpush1.msra.mxu0 0.0
  %346 = vmatprep.subr.mxu0 0.0
  %347 = vmatpush1.msra.mxu0 0.0
  %348 = vmatprep.subr.mxu0 0.0
  %349 = vmatpush1.msra.mxu0 0.0
  %350 = vmatprep.subr.mxu0 0.0
  %351 = vmatpush1.msra.mxu0 0.0
  %352 = vmatprep.subr.mxu0 0.0
  %353 = vmatpush1.msra.mxu0 0.0
  %354 = vmatprep.subr.mxu0 0.0
  %355 = vmatpush1.msra.mxu0 0.0
  %356 = vmatprep.subr.mxu0 0.0
  %357 = vmatpush1.msra.mxu0 0.0
  %358 = vmatprep.subr.mxu0 0.0
  %359 = vmatpush1.msra.mxu0 0.0
  %360 = vmatprep.subr.mxu0 0.0
  %361 = vmatpush1.msra.mxu0 0.0
  %362 = vmatprep.subr.mxu0 0.0
  %363 = vmatpush1.msra.mxu0 0.0
  %364 = vmatprep.subr.mxu0 0.0
  %365 = vmatpush1.msra.mxu0 0.0
  %366 = vmatprep.subr.mxu0 0.0
  %367 = vmatpush1.msra.mxu0 0.0
  %368 = vmatprep.subr.mxu0 0.0
  %369 = vmatpush1.msra.mxu0 0.0
  %370 = vmatprep.subr.mxu0 0.0
  %371 = vmatpush1.msra.mxu0 0.0
  %372 = vmatprep.subr.mxu0 0.0
  %373 = vmatpush1.msra.mxu0 0.0
  %374 = vmatprep.subr.mxu0 0.0
  %375 = vmatpush1.msra.mxu0 0.0
  %376 = vmatprep.subr.mxu0 0.0
  %377 = vmatpush1.msra.mxu0 0.0
  %378 = vmatprep.subr.mxu0 0.0
  %379 = vmatpush1.msra.mxu0 0.0
  %380 = vmatprep.subr.mxu0 0.0
  %381 = vmatpush1.msra.mxu0 0.0
  %382 = vmatprep.subr.mxu0 0.0
  %383 = vmatpush1.msra.mxu0 0.0
  %384 = vmatprep.subr.mxu0 0.0
  %385 = vmatpush1.msra.mxu0 0.0
  %386 = vmatprep.subr.mxu0 0.0
  %387 = vmatpush1.msra.mxu0 0.0
  %388 = vmatprep.subr.mxu0 0.0
  %389 = vmatpush1.msra.mxu0 0.0
  %390 = vmatprep.subr.mxu0 0.0
  %391 = vmatpush1.msra.mxu0 0.0
  %392 = vmatprep.mubr.f32.mxu0 0.0
  %393 = vmatmul.mubr.f32.gmra.mrb[0].mxu0 %v237
  %v394 = vpop.f32.mrb[0].mxu0
  %v395 = vadd.f32 %v223, %v394
  %v396 = vpop.f32.mrb[0].mxu0
  %v397 = vadd.f32 %v223, %v396
  %398 = vmatprep.mubr.f32.mxu0 0.0
  %399 = vmatmul.mubr.f32.gmra.mrb[0].mxu0 %v240
  %v400 = vpop.f32.mrb[0].mxu0
  %v401 = vadd.f32 %v228, %v400
  %v402 = vpop.f32.mrb[0].mxu0
  %v403 = vadd.f32 %v228, %v402
  %404 = vmatprep.mubr.f32.mxu0 0.0
  %405 = vmatmul.mubr.f32.gmra.mrb[0].mxu0 %v243
  %v406 = vpop.f32.mrb[0].mxu0
  %v407 = vadd.f32 %v233, %v406
  %v408 = vpop.f32.mrb[0].mxu0
  %v409 = vadd.f32 %v233, %v408
  %410 = vdwg.mxu0
  %v411 = vtanh.pop %v312
  %v412 = vtanh.pop %v314
  %v413 = vtanh.pop %v395
  %v414 = vtanh.pop %v397
  %v415 = vtanh.pop %v318
  %v416 = vtanh.pop %v320
  %v417 = vtanh.pop %v401
  %v418 = vtanh.pop %v403
  %v419 = vtanh.pop %v324
  %v420 = vtanh.pop %v326
  %v421 = vtanh.pop %v407
  %v422 = vtanh.pop %v409
  %s423 = scalar_lea.vmem %s3, 24
  %v424 = vld [vmem:[%s423] sm:$0xff]
  %v425 = vld [vmem:[%s423 + $0x8] sm:$0xff]
  %v426 = vld [vmem:[%s423 + $0x10] sm:$0xff]
  %s427 = scalar_lea.vmem %s4, 24
  %v428 = vld [vmem:[%s427] sm:$0xff]
  %v429 = vld [vmem:[%s427 + $0x8] sm:$0xff]
  %v430 = vld [vmem:[%s427 + $0x10] sm:$0xff]
  %432 = vset.pattern.permute.xlu0 0
  %433 = vperm.xlu0 %432, %v428
  %v434 = vpop.permute.xlu0 %433
  %437 = vset.pattern.permute.xlu0 0
  %438 = vperm.xlu0 %437, %v429
  %v439 = vpop.permute.xlu0 %438
  %442 = vset.pattern.permute.xlu0 0
  %443 = vperm.xlu0 %442, %v430
  %v444 = vpop.permute.xlu0 %443
  %v447 = vsel %vm235, %v424, 0
  %v450 = vsel %vm235, %v425, 0
  %v453 = vsel %vm235, %v426, 0
  %455 = vmatprep.subr.mxu0 %v412
  %456 = vmatpush1.msra.mxu0 %v411
  %457 = vmatprep.subr.mxu0 %v416
  %458 = vmatpush1.msra.mxu0 %v415
  %459 = vmatprep.subr.mxu0 %v420
  %460 = vmatpush1.msra.mxu0 %v419
  %461 = vmatprep.subr.mxu0 0.0
  %462 = vmatpush1.msra.mxu0 0.0
  %463 = vmatprep.subr.mxu0 0.0
  %464 = vmatpush1.msra.mxu0 0.0
  %465 = vmatprep.subr.mxu0 0.0
  %466 = vmatpush1.msra.mxu0 0.0
  %467 = vmatprep.subr.mxu0 0.0
  %468 = vmatpush1.msra.mxu0 0.0
  %469 = vmatprep.subr.mxu0 0.0
  %470 = vmatpush1.msra.mxu0 0.0
  %471 = vmatprep.subr.mxu0 0.0
  %472 = vmatpush1.msra.mxu0 0.0
  %473 = vmatprep.subr.mxu0 0.0
  %474 = vmatpush1.msra.mxu0 0.0
  %475 = vmatprep.subr.mxu0 0.0
  %476 = vmatpush1.msra.mxu0 0.0
  %477 = vmatprep.subr.mxu0 0.0
  %478 = vmatpush1.msra.mxu0 0.0
  %479 = vmatprep.subr.mxu0 0.0
  %480 = vmatpush1.msra.mxu0 0.0
  %481 = vmatprep.subr.mxu0 0.0
  %482 = vmatpush1.msra.mxu0 0.0
  %483 = vmatprep.subr.mxu0 0.0
  %484 = vmatpush1.msra.mxu0 0.0
  %485 = vmatprep.subr.mxu0 0.0
  %486 = vmatpush1.msra.mxu0 0.0
  %487 = vmatprep.subr.mxu0 0.0
  %488 = vmatpush1.msra.mxu0 0.0
  %489 = vmatprep.subr.mxu0 0.0
  %490 = vmatpush1.msra.mxu0 0.0
  %491 = vmatprep.subr.mxu0 0.0
  %492 = vmatpush1.msra.mxu0 0.0
  %493 = vmatprep.subr.mxu0 0.0
  %494 = vmatpush1.msra.mxu0 0.0
  %495 = vmatprep.subr.mxu0 0.0
  %496 = vmatpush1.msra.mxu0 0.0
  %497 = vmatprep.subr.mxu0 0.0
  %498 = vmatpush1.msra.mxu0 0.0
  %499 = vmatprep.subr.mxu0 0.0
  %500 = vmatpush1.msra.mxu0 0.0
  %501 = vmatprep.subr.mxu0 0.0
  %502 = vmatpush1.msra.mxu0 0.0
  %503 = vmatprep.subr.mxu0 0.0
  %504 = vmatpush1.msra.mxu0 0.0
  %505 = vmatprep.subr.mxu0 0.0
  %506 = vmatpush1.msra.mxu0 0.0
  %507 = vmatprep.subr.mxu0 0.0
  %508 = vmatpush1.msra.mxu0 0.0
  %509 = vmatprep.subr.mxu0 0.0
  %510 = vmatpush1.msra.mxu0 0.0
  %511 = vmatprep.subr.mxu0 0.0
  %512 = vmatpush1.msra.mxu0 0.0
  %513 = vmatprep.subr.mxu0 0.0
  %514 = vmatpush1.msra.mxu0 0.0
  %515 = vmatprep.subr.mxu0 0.0
  %516 = vmatpush1.msra.mxu0 0.0
  %517 = vmatprep.subr.mxu0 0.0
  %518 = vmatpush1.msra.mxu0 0.0
  %519 = vmatprep.mubr.f32.mxu0 0.0
  %520 = vmatmul.mubr.f32.gmra.mrb[0].mxu0 %v447
  %v521 = vpop.f32.mrb[0].mxu0
  %v522 = vadd.f32 %v434, %v521
  %v523 = vpop.f32.mrb[0].mxu0
  %v524 = vadd.f32 %v434, %v523
  %525 = vmatprep.mubr.f32.mxu0 0.0
  %526 = vmatmul.mubr.f32.gmra.mrb[0].mxu0 %v450
  %v527 = vpop.f32.mrb[0].mxu0
  %v528 = vadd.f32 %v439, %v527
  %v529 = vpop.f32.mrb[0].mxu0
  %v530 = vadd.f32 %v439, %v529
  %531 = vmatprep.mubr.f32.mxu0 0.0
  %532 = vmatmul.mubr.f32.gmra.mrb[0].mxu0 %v453
  %v533 = vpop.f32.mrb[0].mxu0
  %v534 = vadd.f32 %v444, %v533
  %v535 = vpop.f32.mrb[0].mxu0
  %v536 = vadd.f32 %v444, %v535
  %537 = vdwg.mxu0
  %538 = vmatprep.subr.mxu0 %v414
  %539 = vmatpush1.msra.mxu0 %v413
  %540 = vmatprep.subr.mxu0 %v418
  %541 = vmatpush1.msra.mxu0 %v417
  %542 = vmatprep.subr.mxu0 %v422
  %543 = vmatpush1.msra.mxu0 %v421
  %544 = vmatprep.subr.mxu0 0.0
  %545 = vmatpush1.msra.mxu0 0.0
  %546 = vmatprep.subr.mxu0 0.0
  %547 = vmatpush1.msra.mxu0 0.0
  %548 = vmatprep.subr.mxu0 0.0
  %549 = vmatpush1.msra.mxu0 0.0
  %550 = vmatprep.subr.mxu0 0.0
  %551 = vmatpush1.msra.mxu0 0.0
  %552 = vmatprep.subr.mxu0 0.0
  %553 = vmatpush1.msra.mxu0 0.0
  %554 = vmatprep.subr.mxu0 0.0
  %555 = vmatpush1.msra.mxu0 0.0
  %556 = vmatprep.subr.mxu0 0.0
  %557 = vmatpush1.msra.mxu0 0.0
  %558 = vmatprep.subr.mxu0 0.0
  %559 = vmatpush1.msra.mxu0 0.0
  %560 = vmatprep.subr.mxu0 0.0
  %561 = vmatpush1.msra.mxu0 0.0
  %562 = vmatprep.subr.mxu0 0.0
  %563 = vmatpush1.msra.mxu0 0.0
  %564 = vmatprep.subr.mxu0 0.0
  %565 = vmatpush1.msra.mxu0 0.0
  %566 = vmatprep.subr.mxu0 0.0
  %567 = vmatpush1.msra.mxu0 0.0
  %568 = vmatprep.subr.mxu0 0.0
  %569 = vmatpush1.msra.mxu0 0.0
  %570 = vmatprep.subr.mxu0 0.0
  %571 = vmatpush1.msra.mxu0 0.0
  %572 = vmatprep.subr.mxu0 0.0
  %573 = vmatpush1.msra.mxu0 0.0
  %574 = vmatprep.subr.mxu0 0.0
  %575 = vmatpush1.msra.mxu0 0.0
  %576 = vmatprep.subr.mxu0 0.0
  %577 = vmatpush1.msra.mxu0 0.0
  %578 = vmatprep.subr.mxu0 0.0
  %579 = vmatpush1.msra.mxu0 0.0
  %580 = vmatprep.subr.mxu0 0.0
  %581 = vmatpush1.msra.mxu0 0.0
  %582 = vmatprep.subr.mxu0 0.0
  %583 = vmatpush1.msra.mxu0 0.0
  %584 = vmatprep.subr.mxu0 0.0
  %585 = vmatpush1.msra.mxu0 0.0
  %586 = vmatprep.subr.mxu0 0.0
  %587 = vmatpush1.msra.mxu0 0.0
  %588 = vmatprep.subr.mxu0 0.0
  %589 = vmatpush1.msra.mxu0 0.0
  %590 = vmatprep.subr.mxu0 0.0
  %591 = vmatpush1.msra.mxu0 0.0
  %592 = vmatprep.subr.mxu0 0.0
  %593 = vmatpush1.msra.mxu0 0.0
  %594 = vmatprep.subr.mxu0 0.0
  %595 = vmatpush1.msra.mxu0 0.0
  %596 = vmatprep.subr.mxu0 0.0
  %597 = vmatpush1.msra.mxu0 0.0
  %598 = vmatprep.subr.mxu0 0.0
  %599 = vmatpush1.msra.mxu0 0.0
  %600 = vmatprep.subr.mxu0 0.0
  %601 = vmatpush1.msra.mxu0 0.0
  %602 = vmatprep.mubr.f32.mxu0 0.0
  %603 = vmatmul.mubr.f32.gmra.mrb[0].mxu0 %v447
  %v604 = vpop.f32.mrb[0].mxu0
  %v605 = vadd.f32 %v434, %v604
  %v606 = vpop.f32.mrb[0].mxu0
  %v607 = vadd.f32 %v434, %v606
  %608 = vmatprep.mubr.f32.mxu0 0.0
  %609 = vmatmul.mubr.f32.gmra.mrb[0].mxu0 %v450
  %v610 = vpop.f32.mrb[0].mxu0
  %v611 = vadd.f32 %v439, %v610
  %v612 = vpop.f32.mrb[0].mxu0
  %v613 = vadd.f32 %v439, %v612
  %614 = vmatprep.mubr.f32.mxu0 0.0
  %615 = vmatmul.mubr.f32.gmra.mrb[0].mxu0 %v453
  %v616 = vpop.f32.mrb[0].mxu0
  %v617 = vadd.f32 %v444, %v616
  %v618 = vpop.f32.mrb[0].mxu0
  %v619 = vadd.f32 %v444, %v618
  %620 = vdwg.mxu0
  %v621 = vtanh.pop %v522
  %v622 = vtanh.pop %v524
  %v623 = vtanh.pop %v605
  %v624 = vtanh.pop %v607
  %v625 = vtanh.pop %v528
  %v626 = vtanh.pop %v530
  %v627 = vtanh.pop %v611
  %v628 = vtanh.pop %v613
  %v629 = vtanh.pop %v534
  %v630 = vtanh.pop %v536
  %v631 = vtanh.pop %v617
  %v632 = vtanh.pop %v619
  %s633 = scalar_lea.vmem %s3, 48
  %v634 = vld [vmem:[%s633] sm:$0xff]
  %v635 = vld [vmem:[%s633 + $0x8] sm:$0xff]
  %v636 = vld [vmem:[%s633 + $0x10] sm:$0xff]
  %s637 = scalar_lea.vmem %s4, 48
  %v638 = vld [vmem:[%s637] sm:$0xff]
  %v639 = vld [vmem:[%s637 + $0x8] sm:$0xff]
  %v640 = vld [vmem:[%s637 + $0x10] sm:$0xff]
  %642 = vset.pattern.permute.xlu0 0
  %643 = vperm.xlu0 %642, %v638
  %v644 = vpop.permute.xlu0 %643
  %647 = vset.pattern.permute.xlu0 0
  %648 = vperm.xlu0 %647, %v639
  %v649 = vpop.permute.xlu0 %648
  %652 = vset.pattern.permute.xlu0 0
  %653 = vperm.xlu0 %652, %v640
  %v654 = vpop.permute.xlu0 %653
  %v657 = vsel %vm235, %v634, 0
  %v660 = vsel %vm235, %v635, 0
  %v663 = vsel %vm235, %v636, 0
  %665 = vmatprep.subr.mxu0 %v622
  %666 = vmatpush1.msra.mxu0 %v621
  %667 = vmatprep.subr.mxu0 %v626
  %668 = vmatpush1.msra.mxu0 %v625
  %669 = vmatprep.subr.mxu0 %v630
  %670 = vmatpush1.msra.mxu0 %v629
  %671 = vmatprep.subr.mxu0 0.0
  %672 = vmatpush1.msra.mxu0 0.0
  %673 = vmatprep.subr.mxu0 0.0
  %674 = vmatpush1.msra.mxu0 0.0
  %675 = vmatprep.subr.mxu0 0.0
  %676 = vmatpush1.msra.mxu0 0.0
  %677 = vmatprep.subr.mxu0 0.0
  %678 = vmatpush1.msra.mxu0 0.0
  %679 = vmatprep.subr.mxu0 0.0
  %680 = vmatpush1.msra.mxu0 0.0
  %681 = vmatprep.subr.mxu0 0.0
  %682 = vmatpush1.msra.mxu0 0.0
  %683 = vmatprep.subr.mxu0 0.0
  %684 = vmatpush1.msra.mxu0 0.0
  %685 = vmatprep.subr.mxu0 0.0
  %686 = vmatpush1.msra.mxu0 0.0
  %687 = vmatprep.subr.mxu0 0.0
  %688 = vmatpush1.msra.mxu0 0.0
  %689 = vmatprep.subr.mxu0 0.0
  %690 = vmatpush1.msra.mxu0 0.0
  %691 = vmatprep.subr.mxu0 0.0
  %692 = vmatpush1.msra.mxu0 0.0
  %693 = vmatprep.subr.mxu0 0.0
  %694 = vmatpush1.msra.mxu0 0.0
  %695 = vmatprep.subr.mxu0 0.0
  %696 = vmatpush1.msra.mxu0 0.0
  %697 = vmatprep.subr.mxu0 0.0
  %698 = vmatpush1.msra.mxu0 0.0
  %699 = vmatprep.subr.mxu0 0.0
  %700 = vmatpush1.msra.mxu0 0.0
  %701 = vmatprep.subr.mxu0 0.0
  %702 = vmatpush1.msra.mxu0 0.0
  %703 = vmatprep.subr.mxu0 0.0
  %704 = vmatpush1.msra.mxu0 0.0
  %705 = vmatprep.subr.mxu0 0.0
  %706 = vmatpush1.msra.mxu0 0.0
  %707 = vmatprep.subr.mxu0 0.0
  %708 = vmatpush1.msra.mxu0 0.0
  %709 = vmatprep.subr.mxu0 0.0
  %710 = vmatpush1.msra.mxu0 0.0
  %711 = vmatprep.subr.mxu0 0.0
  %712 = vmatpush1.msra.mxu0 0.0
  %713 = vmatprep.subr.mxu0 0.0
  %714 = vmatpush1.msra.mxu0 0.0
  %715 = vmatprep.subr.mxu0 0.0
  %716 = vmatpush1.msra.mxu0 0.0
  %717 = vmatprep.subr.mxu0 0.0
  %718 = vmatpush1.msra.mxu0 0.0
  %719 = vmatprep.subr.mxu0 0.0
  %720 = vmatpush1.msra.mxu0 0.0
  %721 = vmatprep.subr.mxu0 0.0
  %722 = vmatpush1.msra.mxu0 0.0
  %723 = vmatprep.subr.mxu0 0.0
  %724 = vmatpush1.msra.mxu0 0.0
  %725 = vmatprep.subr.mxu0 0.0
  %726 = vmatpush1.msra.mxu0 0.0
  %727 = vmatprep.subr.mxu0 0.0
  %728 = vmatpush1.msra.mxu0 0.0
  %729 = vmatprep.mubr.f32.mxu0 0.0
  %730 = vmatmul.mubr.f32.gmra.mrb[0].mxu0 %v657
  %v731 = vpop.f32.mrb[0].mxu0
  %v732 = vadd.f32 %v644, %v731
  %v733 = vpop.f32.mrb[0].mxu0
  %v734 = vadd.f32 %v644, %v733
  %735 = vmatprep.mubr.f32.mxu0 0.0
  %736 = vmatmul.mubr.f32.gmra.mrb[0].mxu0 %v660
  %v737 = vpop.f32.mrb[0].mxu0
  %v738 = vadd.f32 %v649, %v737
  %v739 = vpop.f32.mrb[0].mxu0
  %v740 = vadd.f32 %v649, %v739
  %741 = vmatprep.mubr.f32.mxu0 0.0
  %742 = vmatmul.mubr.f32.gmra.mrb[0].mxu0 %v663
  %v743 = vpop.f32.mrb[0].mxu0
  %v744 = vadd.f32 %v654, %v743
  %v745 = vpop.f32.mrb[0].mxu0
  %v746 = vadd.f32 %v654, %v745
  %747 = vdwg.mxu0
  %748 = vmatprep.subr.mxu0 %v624
  %749 = vmatpush1.msra.mxu0 %v623
  %750 = vmatprep.subr.mxu0 %v628
  %751 = vmatpush1.msra.mxu0 %v627
  %752 = vmatprep.subr.mxu0 %v632
  %753 = vmatpush1.msra.mxu0 %v631
  %754 = vmatprep.subr.mxu0 0.0
  %755 = vmatpush1.msra.mxu0 0.0
  %756 = vmatprep.subr.mxu0 0.0
  %757 = vmatpush1.msra.mxu0 0.0
  %758 = vmatprep.subr.mxu0 0.0
  %759 = vmatpush1.msra.mxu0 0.0
  %760 = vmatprep.subr.mxu0 0.0
  %761 = vmatpush1.msra.mxu0 0.0
  %762 = vmatprep.subr.mxu0 0.0
  %763 = vmatpush1.msra.mxu0 0.0
  %764 = vmatprep.subr.mxu0 0.0
  %765 = vmatpush1.msra.mxu0 0.0
  %766 = vmatprep.subr.mxu0 0.0
  %767 = vmatpush1.msra.mxu0 0.0
  %768 = vmatprep.subr.mxu0 0.0
  %769 = vmatpush1.msra.mxu0 0.0
  %770 = vmatprep.subr.mxu0 0.0
  %771 = vmatpush1.msra.mxu0 0.0
  %772 = vmatprep.subr.mxu0 0.0
  %773 = vmatpush1.msra.mxu0 0.0
  %774 = vmatprep.subr.mxu0 0.0
  %775 = vmatpush1.msra.mxu0 0.0
  %776 = vmatprep.subr.mxu0 0.0
  %777 = vmatpush1.msra.mxu0 0.0
  %778 = vmatprep.subr.mxu0 0.0
  %779 = vmatpush1.msra.mxu0 0.0
  %780 = vmatprep.subr.mxu0 0.0
  %781 = vmatpush1.msra.mxu0 0.0
  %782 = vmatprep.subr.mxu0 0.0
  %783 = vmatpush1.msra.mxu0 0.0
  %784 = vmatprep.subr.mxu0 0.0
  %785 = vmatpush1.msra.mxu0 0.0
  %786 = vmatprep.subr.mxu0 0.0
  %787 = vmatpush1.msra.mxu0 0.0
  %788 = vmatprep.subr.mxu0 0.0
  %789 = vmatpush1.msra.mxu0 0.0
  %790 = vmatprep.subr.mxu0 0.0
  %791 = vmatpush1.msra.mxu0 0.0
  %792 = vmatprep.subr.mxu0 0.0
  %793 = vmatpush1.msra.mxu0 0.0
  %794 = vmatprep.subr.mxu0 0.0
  %795 = vmatpush1.msra.mxu0 0.0
  %796 = vmatprep.subr.mxu0 0.0
  %797 = vmatpush1.msra.mxu0 0.0
  %798 = vmatprep.subr.mxu0 0.0
  %799 = vmatpush1.msra.mxu0 0.0
  %800 = vmatprep.subr.mxu0 0.0
  %801 = vmatpush1.msra.mxu0 0.0
  %802 = vmatprep.subr.mxu0 0.0
  %803 = vmatpush1.msra.mxu0 0.0
  %804 = vmatprep.subr.mxu0 0.0
  %805 = vmatpush1.msra.mxu0 0.0
  %806 = vmatprep.subr.mxu0 0.0
  %807 = vmatpush1.msra.mxu0 0.0
  %808 = vmatprep.subr.mxu0 0.0
  %809 = vmatpush1.msra.mxu0 0.0
  %810 = vmatprep.subr.mxu0 0.0
  %811 = vmatpush1.msra.mxu0 0.0
  %812 = vmatprep.mubr.f32.mxu0 0.0
  %813 = vmatmul.mubr.f32.gmra.mrb[0].mxu0 %v657
  %v814 = vpop.f32.mrb[0].mxu0
  %v815 = vadd.f32 %v644, %v814
  %v816 = vpop.f32.mrb[0].mxu0
  %v817 = vadd.f32 %v644, %v816
  %818 = vmatprep.mubr.f32.mxu0 0.0
  %819 = vmatmul.mubr.f32.gmra.mrb[0].mxu0 %v660
  %v820 = vpop.f32.mrb[0].mxu0
  %v821 = vadd.f32 %v649, %v820
  %v822 = vpop.f32.mrb[0].mxu0
  %v823 = vadd.f32 %v649, %v822
  %824 = vmatprep.mubr.f32.mxu0 0.0
  %825 = vmatmul.mubr.f32.gmra.mrb[0].mxu0 %v663
  %v826 = vpop.f32.mrb[0].mxu0
  %v827 = vadd.f32 %v654, %v826
  %v828 = vpop.f32.mrb[0].mxu0
  %v829 = vadd.f32 %v654, %v828
  %830 = vdwg.mxu0
  %v831 = vtanh.pop %v732
  %v832 = vtanh.pop %v734
  %v833 = vtanh.pop %v815
  %v834 = vtanh.pop %v817
  %v835 = vtanh.pop %v738
  %v836 = vtanh.pop %v740
  %v837 = vtanh.pop %v821
  %v838 = vtanh.pop %v823
  %v839 = vtanh.pop %v744
  %v840 = vtanh.pop %v746
  %v841 = vtanh.pop %v827
  %v842 = vtanh.pop %v829
  %s843 = scalar_lea.vmem %s3, 72
  %v844 = vld [vmem:[%s843] sm:$0xff]
  %v845 = vld [vmem:[%s843 + $0x8] sm:$0xff]
  %v846 = vld [vmem:[%s843 + $0x10] sm:$0xff]
  %s847 = scalar_lea.vmem %s4, 72
  %v848 = vld [vmem:[%s847] sm:$0xff]
  %v849 = vld [vmem:[%s847 + $0x8] sm:$0xff]
  %v850 = vld [vmem:[%s847 + $0x10] sm:$0xff]
  %852 = vset.pattern.permute.xlu0 0
  %853 = vperm.xlu0 %852, %v848
  %v854 = vpop.permute.xlu0 %853
  %857 = vset.pattern.permute.xlu0 0
  %858 = vperm.xlu0 %857, %v849
  %v859 = vpop.permute.xlu0 %858
  %862 = vset.pattern.permute.xlu0 0
  %863 = vperm.xlu0 %862, %v850
  %v864 = vpop.permute.xlu0 %863
  %v867 = vsel %vm235, %v844, 0
  %v870 = vsel %vm235, %v845, 0
  %v873 = vsel %vm235, %v846, 0
  %875 = vmatprep.subr.mxu0 %v832
  %876 = vmatpush1.msra.mxu0 %v831
  %877 = vmatprep.subr.mxu0 %v836
  %878 = vmatpush1.msra.mxu0 %v835
  %879 = vmatprep.subr.mxu0 %v840
  %880 = vmatpush1.msra.mxu0 %v839
  %881 = vmatprep.subr.mxu0 0.0
  %882 = vmatpush1.msra.mxu0 0.0
  %883 = vmatprep.subr.mxu0 0.0
  %884 = vmatpush1.msra.mxu0 0.0
  %885 = vmatprep.subr.mxu0 0.0
  %886 = vmatpush1.msra.mxu0 0.0
  %887 = vmatprep.subr.mxu0 0.0
  %888 = vmatpush1.msra.mxu0 0.0
  %889 = vmatprep.subr.mxu0 0.0
  %890 = vmatpush1.msra.mxu0 0.0
  %891 = vmatprep.subr.mxu0 0.0
  %892 = vmatpush1.msra.mxu0 0.0
  %893 = vmatprep.subr.mxu0 0.0
  %894 = vmatpush1.msra.mxu0 0.0
  %895 = vmatprep.subr.mxu0 0.0
  %896 = vmatpush1.msra.mxu0 0.0
  %897 = vmatprep.subr.mxu0 0.0
  %898 = vmatpush1.msra.mxu0 0.0
  %899 = vmatprep.subr.mxu0 0.0
  %900 = vmatpush1.msra.mxu0 0.0
  %901 = vmatprep.subr.mxu0 0.0
  %902 = vmatpush1.msra.mxu0 0.0
  %903 = vmatprep.subr.mxu0 0.0
  %904 = vmatpush1.msra.mxu0 0.0
  %905 = vmatprep.subr.mxu0 0.0
  %906 = vmatpush1.msra.mxu0 0.0
  %907 = vmatprep.subr.mxu0 0.0
  %908 = vmatpush1.msra.mxu0 0.0
  %909 = vmatprep.subr.mxu0 0.0
  %910 = vmatpush1.msra.mxu0 0.0
  %911 = vmatprep.subr.mxu0 0.0
  %912 = vmatpush1.msra.mxu0 0.0
  %913 = vmatprep.subr.mxu0 0.0
  %914 = vmatpush1.msra.mxu0 0.0
  %915 = vmatprep.subr.mxu0 0.0
  %916 = vmatpush1.msra.mxu0 0.0
  %917 = vmatprep.subr.mxu0 0.0
  %918 = vmatpush1.msra.mxu0 0.0
  %919 = vmatprep.subr.mxu0 0.0
  %920 = vmatpush1.msra.mxu0 0.0
  %921 = vmatprep.subr.mxu0 0.0
  %922 = vmatpush1.msra.mxu0 0.0
  %923 = vmatprep.subr.mxu0 0.0
  %924 = vmatpush1.msra.mxu0 0.0
  %925 = vmatprep.subr.mxu0 0.0
  %926 = vmatpush1.msra.mxu0 0.0
  %927 = vmatprep.subr.mxu0 0.0
  %928 = vmatpush1.msra.mxu0 0.0
  %929 = vmatprep.subr.mxu0 0.0
  %930 = vmatpush1.msra.mxu0 0.0
  %931 = vmatprep.subr.mxu0 0.0
  %932 = vmatpush1.msra.mxu0 0.0
  %933 = vmatprep.subr.mxu0 0.0
  %934 = vmatpush1.msra.mxu0 0.0
  %935 = vmatprep.subr.mxu0 0.0
  %936 = vmatpush1.msra.mxu0 0.0
  %937 = vmatprep.subr.mxu0 0.0
  %938 = vmatpush1.msra.mxu0 0.0
  %939 = vmatprep.mubr.f32.mxu0 0.0
  %940 = vmatmul.mubr.f32.gmra.mrb[0].mxu0 %v867
  %v941 = vpop.f32.mrb[0].mxu0
  %v942 = vadd.f32 %v854, %v941
  %v943 = vpop.f32.mrb[0].mxu0
  %v944 = vadd.f32 %v854, %v943
  %945 = vmatprep.mubr.f32.mxu0 0.0
  %946 = vmatmul.mubr.f32.gmra.mrb[0].mxu0 %v870
  %v947 = vpop.f32.mrb[0].mxu0
  %v948 = vadd.f32 %v859, %v947
  %v949 = vpop.f32.mrb[0].mxu0
  %v950 = vadd.f32 %v859, %v949
  %951 = vmatprep.mubr.f32.mxu0 0.0
  %952 = vmatmul.mubr.f32.gmra.mrb[0].mxu0 %v873
  %v953 = vpop.f32.mrb[0].mxu0
  %v954 = vadd.f32 %v864, %v953
  %v955 = vpop.f32.mrb[0].mxu0
  %v956 = vadd.f32 %v864, %v955
  %957 = vdwg.mxu0
  %958 = vmatprep.subr.mxu0 %v834
  %959 = vmatpush1.msra.mxu0 %v833
  %960 = vmatprep.subr.mxu0 %v838
  %961 = vmatpush1.msra.mxu0 %v837
  %962 = vmatprep.subr.mxu0 %v842
  %963 = vmatpush1.msra.mxu0 %v841
  %964 = vmatprep.subr.mxu0 0.0
  %965 = vmatpush1.msra.mxu0 0.0
  %966 = vmatprep.subr.mxu0 0.0
  %967 = vmatpush1.msra.mxu0 0.0
  %968 = vmatprep.subr.mxu0 0.0
  %969 = vmatpush1.msra.mxu0 0.0
  %970 = vmatprep.subr.mxu0 0.0
  %971 = vmatpush1.msra.mxu0 0.0
  %972 = vmatprep.subr.mxu0 0.0
  %973 = vmatpush1.msra.mxu0 0.0
  %974 = vmatprep.subr.mxu0 0.0
  %975 = vmatpush1.msra.mxu0 0.0
  %976 = vmatprep.subr.mxu0 0.0
  %977 = vmatpush1.msra.mxu0 0.0
  %978 = vmatprep.subr.mxu0 0.0
  %979 = vmatpush1.msra.mxu0 0.0
  %980 = vmatprep.subr.mxu0 0.0
  %981 = vmatpush1.msra.mxu0 0.0
  %982 = vmatprep.subr.mxu0 0.0
  %983 = vmatpush1.msra.mxu0 0.0
  %984 = vmatprep.subr.mxu0 0.0
  %985 = vmatpush1.msra.mxu0 0.0
  %986 = vmatprep.subr.mxu0 0.0
  %987 = vmatpush1.msra.mxu0 0.0
  %988 = vmatprep.subr.mxu0 0.0
  %989 = vmatpush1.msra.mxu0 0.0
  %990 = vmatprep.subr.mxu0 0.0
  %991 = vmatpush1.msra.mxu0 0.0
  %992 = vmatprep.subr.mxu0 0.0
  %993 = vmatpush1.msra.mxu0 0.0
  %994 = vmatprep.subr.mxu0 0.0
  %995 = vmatpush1.msra.mxu0 0.0
  %996 = vmatprep.subr.mxu0 0.0
  %997 = vmatpush1.msra.mxu0 0.0
  %998 = vmatprep.subr.mxu0 0.0
  %999 = vmatpush1.msra.mxu0 0.0
  %1000 = vmatprep.subr.mxu0 0.0
  %1001 = vmatpush1.msra.mxu0 0.0
  %1002 = vmatprep.subr.mxu0 0.0
  %1003 = vmatpush1.msra.mxu0 0.0
  %1004 = vmatprep.subr.mxu0 0.0
  %1005 = vmatpush1.msra.mxu0 0.0
  %1006 = vmatprep.subr.mxu0 0.0
  %1007 = vmatpush1.msra.mxu0 0.0
  %1008 = vmatprep.subr.mxu0 0.0
  %1009 = vmatpush1.msra.mxu0 0.0
  %1010 = vmatprep.subr.mxu0 0.0
  %1011 = vmatpush1.msra.mxu0 0.0
  %1012 = vmatprep.subr.mxu0 0.0
  %1013 = vmatpush1.msra.mxu0 0.0
  %1014 = vmatprep.subr.mxu0 0.0
  %1015 = vmatpush1.msra.mxu0 0.0
  %1016 = vmatprep.subr.mxu0 0.0
  %1017 = vmatpush1.msra.mxu0 0.0
  %1018 = vmatprep.subr.mxu0 0.0
  %1019 = vmatpush1.msra.mxu0 0.0
  %1020 = vmatprep.subr.mxu0 0.0
  %1021 = vmatpush1.msra.mxu0 0.0
  %1022 = vmatprep.mubr.f32.mxu0 0.0
  %1023 = vmatmul.mubr.f32.gmra.mrb[0].mxu0 %v867
  %v1024 = vpop.f32.mrb[0].mxu0
  %v1025 = vadd.f32 %v854, %v1024
  %v1026 = vpop.f32.mrb[0].mxu0
  %v1027 = vadd.f32 %v854, %v1026
  %1028 = vmatprep.mubr.f32.mxu0 0.0
  %1029 = vmatmul.mubr.f32.gmra.mrb[0].mxu0 %v870
  %v1030 = vpop.f32.mrb[0].mxu0
  %v1031 = vadd.f32 %v859, %v1030
  %v1032 = vpop.f32.mrb[0].mxu0
  %v1033 = vadd.f32 %v859, %v1032
  %1034 = vmatprep.mubr.f32.mxu0 0.0
  %1035 = vmatmul.mubr.f32.gmra.mrb[0].mxu0 %v873
  %v1036 = vpop.f32.mrb[0].mxu0
  %v1037 = vadd.f32 %v864, %v1036
  %v1038 = vpop.f32.mrb[0].mxu0
  %v1039 = vadd.f32 %v864, %v1038
  %1040 = vdwg.mxu0
  %v1041 = vtanh.pop %v942
  %v1042 = vtanh.pop %v944
  %v1043 = vtanh.pop %v1025
  %v1044 = vtanh.pop %v1027
  %v1045 = vtanh.pop %v948
  %v1046 = vtanh.pop %v950
  %v1047 = vtanh.pop %v1031
  %v1048 = vtanh.pop %v1033
  %v1049 = vtanh.pop %v954
  %v1050 = vtanh.pop %v956
  %v1051 = vtanh.pop %v1037
  %v1052 = vtanh.pop %v1039
  %s1053 = scalar_lea.vmem %s3, 96
  %v1054 = vld [vmem:[%s1053] sm:$0xff]
  %v1055 = vld [vmem:[%s1053 + $0x8] sm:$0xff]
  %v1056 = vld [vmem:[%s1053 + $0x10] sm:$0xff]
  %s1057 = scalar_lea.vmem %s4, 96
  %v1058 = vld [vmem:[%s1057] sm:$0xff]
  %v1059 = vld [vmem:[%s1057 + $0x8] sm:$0xff]
  %v1060 = vld [vmem:[%s1057 + $0x10] sm:$0xff]
  %1062 = vset.pattern.permute.xlu0 0
  %1063 = vperm.xlu0 %1062, %v1058
  %v1064 = vpop.permute.xlu0 %1063
  %1067 = vset.pattern.permute.xlu0 0
  %1068 = vperm.xlu0 %1067, %v1059
  %v1069 = vpop.permute.xlu0 %1068
  %1072 = vset.pattern.permute.xlu0 0
  %1073 = vperm.xlu0 %1072, %v1060
  %v1074 = vpop.permute.xlu0 %1073
  %v1077 = vsel %vm235, %v1054, 0
  %v1080 = vsel %vm235, %v1055, 0
  %v1083 = vsel %vm235, %v1056, 0
  %1085 = vmatprep.subr.mxu0 %v1042
  %1086 = vmatpush1.msra.mxu0 %v1041
  %1087 = vmatprep.subr.mxu0 %v1046
  %1088 = vmatpush1.msra.mxu0 %v1045
  %1089 = vmatprep.subr.mxu0 %v1050
  %1090 = vmatpush1.msra.mxu0 %v1049
  %1091 = vmatprep.subr.mxu0 0.0
  %1092 = vmatpush1.msra.mxu0 0.0
  %1093 = vmatprep.subr.mxu0 0.0
  %1094 = vmatpush1.msra.mxu0 0.0
  %1095 = vmatprep.subr.mxu0 0.0
  %1096 = vmatpush1.msra.mxu0 0.0
  %1097 = vmatprep.subr.mxu0 0.0
  %1098 = vmatpush1.msra.mxu0 0.0
  %1099 = vmatprep.subr.mxu0 0.0
  %1100 = vmatpush1.msra.mxu0 0.0
  %1101 = vmatprep.subr.mxu0 0.0
  %1102 = vmatpush1.msra.mxu0 0.0
  %1103 = vmatprep.subr.mxu0 0.0
  %1104 = vmatpush1.msra.mxu0 0.0
  %1105 = vmatprep.subr.mxu0 0.0
  %1106 = vmatpush1.msra.mxu0 0.0
  %1107 = vmatprep.subr.mxu0 0.0
  %1108 = vmatpush1.msra.mxu0 0.0
  %1109 = vmatprep.subr.mxu0 0.0
  %1110 = vmatpush1.msra.mxu0 0.0
  %1111 = vmatprep.subr.mxu0 0.0
  %1112 = vmatpush1.msra.mxu0 0.0
  %1113 = vmatprep.subr.mxu0 0.0
  %1114 = vmatpush1.msra.mxu0 0.0
  %1115 = vmatprep.subr.mxu0 0.0
  %1116 = vmatpush1.msra.mxu0 0.0
  %1117 = vmatprep.subr.mxu0 0.0
  %1118 = vmatpush1.msra.mxu0 0.0
  %1119 = vmatprep.subr.mxu0 0.0
  %1120 = vmatpush1.msra.mxu0 0.0
  %1121 = vmatprep.subr.mxu0 0.0
  %1122 = vmatpush1.msra.mxu0 0.0
  %1123 = vmatprep.subr.mxu0 0.0
  %1124 = vmatpush1.msra.mxu0 0.0
  %1125 = vmatprep.subr.mxu0 0.0
  %1126 = vmatpush1.msra.mxu0 0.0
  %1127 = vmatprep.subr.mxu0 0.0
  %1128 = vmatpush1.msra.mxu0 0.0
  %1129 = vmatprep.subr.mxu0 0.0
  %1130 = vmatpush1.msra.mxu0 0.0
  %1131 = vmatprep.subr.mxu0 0.0
  %1132 = vmatpush1.msra.mxu0 0.0
  %1133 = vmatprep.subr.mxu0 0.0
  %1134 = vmatpush1.msra.mxu0 0.0
  %1135 = vmatprep.subr.mxu0 0.0
  %1136 = vmatpush1.msra.mxu0 0.0
  %1137 = vmatprep.subr.mxu0 0.0
  %1138 = vmatpush1.msra.mxu0 0.0
  %1139 = vmatprep.subr.mxu0 0.0
  %1140 = vmatpush1.msra.mxu0 0.0
  %1141 = vmatprep.subr.mxu0 0.0
  %1142 = vmatpush1.msra.mxu0 0.0
  %1143 = vmatprep.subr.mxu0 0.0
  %1144 = vmatpush1.msra.mxu0 0.0
  %1145 = vmatprep.subr.mxu0 0.0
  %1146 = vmatpush1.msra.mxu0 0.0
  %1147 = vmatprep.subr.mxu0 0.0
  %1148 = vmatpush1.msra.mxu0 0.0
  %1149 = vmatprep.mubr.f32.mxu0 0.0
  %1150 = vmatmul.mubr.f32.gmra.mrb[0].mxu0 %v1077
  %v1151 = vpop.f32.mrb[0].mxu0
  %v1152 = vadd.f32 %v1064, %v1151
  %v1153 = vpop.f32.mrb[0].mxu0
  %v1154 = vadd.f32 %v1064, %v1153
  %1155 = vmatprep.mubr.f32.mxu0 0.0
  %1156 = vmatmul.mubr.f32.gmra.mrb[0].mxu0 %v1080
  %v1157 = vpop.f32.mrb[0].mxu0
  %v1158 = vadd.f32 %v1069, %v1157
  %v1159 = vpop.f32.mrb[0].mxu0
  %v1160 = vadd.f32 %v1069, %v1159
  %1161 = vmatprep.mubr.f32.mxu0 0.0
  %1162 = vmatmul.mubr.f32.gmra.mrb[0].mxu0 %v1083
  %v1163 = vpop.f32.mrb[0].mxu0
  %v1164 = vadd.f32 %v1074, %v1163
  %v1165 = vpop.f32.mrb[0].mxu0
  %v1166 = vadd.f32 %v1074, %v1165
  %1167 = vdwg.mxu0
  %1168 = vmatprep.subr.mxu0 %v1044
  %1169 = vmatpush1.msra.mxu0 %v1043
  %1170 = vmatprep.subr.mxu0 %v1048
  %1171 = vmatpush1.msra.mxu0 %v1047
  %1172 = vmatprep.subr.mxu0 %v1052
  %1173 = vmatpush1.msra.mxu0 %v1051
  %1174 = vmatprep.subr.mxu0 0.0
  %1175 = vmatpush1.msra.mxu0 0.0
  %1176 = vmatprep.subr.mxu0 0.0
  %1177 = vmatpush1.msra.mxu0 0.0
  %1178 = vmatprep.subr.mxu0 0.0
  %1179 = vmatpush1.msra.mxu0 0.0
  %1180 = vmatprep.subr.mxu0 0.0
  %1181 = vmatpush1.msra.mxu0 0.0
  %1182 = vmatprep.subr.mxu0 0.0
  %1183 = vmatpush1.msra.mxu0 0.0
  %1184 = vmatprep.subr.mxu0 0.0
  %1185 = vmatpush1.msra.mxu0 0.0
  %1186 = vmatprep.subr.mxu0 0.0
  %1187 = vmatpush1.msra.mxu0 0.0
  %1188 = vmatprep.subr.mxu0 0.0
  %1189 = vmatpush1.msra.mxu0 0.0
  %1190 = vmatprep.subr.mxu0 0.0
  %1191 = vmatpush1.msra.mxu0 0.0
  %1192 = vmatprep.subr.mxu0 0.0
  %1193 = vmatpush1.msra.mxu0 0.0
  %1194 = vmatprep.subr.mxu0 0.0
  %1195 = vmatpush1.msra.mxu0 0.0
  %1196 = vmatprep.subr.mxu0 0.0
  %1197 = vmatpush1.msra.mxu0 0.0
  %1198 = vmatprep.subr.mxu0 0.0
  %1199 = vmatpush1.msra.mxu0 0.0
  %1200 = vmatprep.subr.mxu0 0.0
  %1201 = vmatpush1.msra.mxu0 0.0
  %1202 = vmatprep.subr.mxu0 0.0
  %1203 = vmatpush1.msra.mxu0 0.0
  %1204 = vmatprep.subr.mxu0 0.0
  %1205 = vmatpush1.msra.mxu0 0.0
  %1206 = vmatprep.subr.mxu0 0.0
  %1207 = vmatpush1.msra.mxu0 0.0
  %1208 = vmatprep.subr.mxu0 0.0
  %1209 = vmatpush1.msra.mxu0 0.0
  %1210 = vmatprep.subr.mxu0 0.0
  %1211 = vmatpush1.msra.mxu0 0.0
  %1212 = vmatprep.subr.mxu0 0.0
  %1213 = vmatpush1.msra.mxu0 0.0
  %1214 = vmatprep.subr.mxu0 0.0
  %1215 = vmatpush1.msra.mxu0 0.0
  %1216 = vmatprep.subr.mxu0 0.0
  %1217 = vmatpush1.msra.mxu0 0.0
  %1218 = vmatprep.subr.mxu0 0.0
  %1219 = vmatpush1.msra.mxu0 0.0
  %1220 = vmatprep.subr.mxu0 0.0
  %1221 = vmatpush1.msra.mxu0 0.0
  %1222 = vmatprep.subr.mxu0 0.0
  %1223 = vmatpush1.msra.mxu0 0.0
  %1224 = vmatprep.subr.mxu0 0.0
  %1225 = vmatpush1.msra.mxu0 0.0
  %1226 = vmatprep.subr.mxu0 0.0
  %1227 = vmatpush1.msra.mxu0 0.0
  %1228 = vmatprep.subr.mxu0 0.0
  %1229 = vmatpush1.msra.mxu0 0.0
  %1230 = vmatprep.subr.mxu0 0.0
  %1231 = vmatpush1.msra.mxu0 0.0
  %1232 = vmatprep.mubr.f32.mxu0 0.0
  %1233 = vmatmul.mubr.f32.gmra.mrb[0].mxu0 %v1077
  %v1234 = vpop.f32.mrb[0].mxu0
  %v1235 = vadd.f32 %v1064, %v1234
  %v1236 = vpop.f32.mrb[0].mxu0
  %v1237 = vadd.f32 %v1064, %v1236
  %1238 = vmatprep.mubr.f32.mxu0 0.0
  %1239 = vmatmul.mubr.f32.gmra.mrb[0].mxu0 %v1080
  %v1240 = vpop.f32.mrb[0].mxu0
  %v1241 = vadd.f32 %v1069, %v1240
  %v1242 = vpop.f32.mrb[0].mxu0
  %v1243 = vadd.f32 %v1069, %v1242
  %1244 = vmatprep.mubr.f32.mxu0 0.0
  %1245 = vmatmul.mubr.f32.gmra.mrb[0].mxu0 %v1083
  %v1246 = vpop.f32.mrb[0].mxu0
  %v1247 = vadd.f32 %v1074, %v1246
  %v1248 = vpop.f32.mrb[0].mxu0
  %v1249 = vadd.f32 %v1074, %v1248
  %1250 = vdwg.mxu0
  %v1251 = vtanh.pop %v1152
  %v1252 = vtanh.pop %v1154
  %v1253 = vtanh.pop %v1235
  %v1254 = vtanh.pop %v1237
  %v1255 = vtanh.pop %v1158
  %v1256 = vtanh.pop %v1160
  %v1257 = vtanh.pop %v1241
  %v1258 = vtanh.pop %v1243
  %v1259 = vtanh.pop %v1164
  %v1260 = vtanh.pop %v1166
  %v1261 = vtanh.pop %v1247
  %v1262 = vtanh.pop %v1249
  %1264 = vset.pattern.permute.xlu0 0
  %1265 = vperm.xlu0 %1264, %v34
  %v1266 = vpop.permute.xlu0 %1265
  %1269 = vset.pattern.permute.xlu0 0
  %1270 = vperm.xlu0 %1269, %v35
  %v1271 = vpop.permute.xlu0 %1270
  %1274 = vset.pattern.permute.xlu0 0
  %1275 = vperm.xlu0 %1274, %v36
  %v1276 = vpop.permute.xlu0 %1275
  %v1278 = vmul.f32 %v1266, %v1251
  %v1279 = vmul.f32 %v1266, %v1252
  %v1280 = vmul.f32 %v1266, %v1253
  %v1281 = vmul.f32 %v1266, %v1254
  %v1282 = vmul.f32 %v1271, %v1255
  %v1283 = vmul.f32 %v1271, %v1256
  %v1284 = vmul.f32 %v1271, %v1257
  %v1285 = vmul.f32 %v1271, %v1258
  %v1286 = vmul.f32 %v1276, %v1259
  %v1287 = vmul.f32 %v1276, %v1260
  %v1288 = vmul.f32 %v1276, %v1261
  %v1289 = vmul.f32 %v1276, %v1262
  %v1290 = vadd.f32 %v1278, %v1282
  %v1291 = vadd.f32 %v1290, %v1286
  %v1292 = vrot.slane %v1291, 4
  %v1293 = vadd.f32 %v1291, %v1292
  %v1294 = vrot.slane %v1293, 2
  %v1295 = vadd.f32 %v1293, %v1294
  %v1296 = vrot.slane %v1295, 1
  %v1297 = vadd.f32 %v1295, %v1296
  %v1298 = vadd.f32 %v1279, %v1283
  %v1299 = vadd.f32 %v1298, %v1287
  %v1300 = vrot.slane %v1299, 4
  %v1301 = vadd.f32 %v1299, %v1300
  %v1302 = vrot.slane %v1301, 2
  %v1303 = vadd.f32 %v1301, %v1302
  %v1304 = vrot.slane %v1303, 1
  %v1305 = vadd.f32 %v1303, %v1304
  %v1306 = vadd.f32 %v1280, %v1284
  %v1307 = vadd.f32 %v1306, %v1288
  %v1308 = vrot.slane %v1307, 4
  %v1309 = vadd.f32 %v1307, %v1308
  %v1310 = vrot.slane %v1309, 2
  %v1311 = vadd.f32 %v1309, %v1310
  %v1312 = vrot.slane %v1311, 1
  %v1313 = vadd.f32 %v1311, %v1312
  %v1314 = vadd.f32 %v1281, %v1285
  %v1315 = vadd.f32 %v1314, %v1289
  %v1316 = vrot.slane %v1315, 4
  %v1317 = vadd.f32 %v1315, %v1316
  %v1318 = vrot.slane %v1317, 2
  %v1319 = vadd.f32 %v1317, %v1318
  %v1320 = vrot.slane %v1319, 1
  %v1321 = vadd.f32 %v1319, %v1320
  %1323 = vset.pattern.permute.xlu0 0
  %1324 = vperm.xlu0 %1323, %v37
  %v1325 = vpop.permute.xlu0 %1324
  %v1327 = vlaneseq
  %v1328 = vshrl.u32 %v1327, 7
  %v1329 = vsub.s32 0, %v1328
  %v1330 = vrot.slane %v1325, %v1329
  %v1331 = vadd.f32 %v1297, %v1330
  %v1332 = vadd.f32 %v1305, %v1330
  %v1333 = vadd.f32 %v1313, %v1330
  %v1334 = vadd.f32 %v1321, %v1330
  %v1339 = vcombine.low %v1331, %v1332
  %v1340 = vcombine.low %v1333, %v1334
  %v1342 = vunpack.c.l.s4 1966171168
  %v1343 = vunpack.c.0.s8 %v1342
  %v1344 = vlaneseq
  %v1345 = vshrl.u32 %v1344, 7
  %v1346 = vsub.s32 %v1343, %v1345
  %v1347 = vrot.slane %v1339, %v1346
  %v1349 = vunpack.c.l.s4 1966171168
  %v1350 = vunpack.c.0.s8 %v1349
  %v1351 = vlaneseq
  %v1352 = vshrl.u32 %v1351, 7
  %v1353 = vsub.s32 %v1350, %v1352
  %v1354 = vrot.slane %v1340, %v1353
  %v1355 = vcombine.low %v1347, %v1354
  %v1357 = vunpack.c.l.s4 1966171168
  %v1358 = vunpack.c.0.s8 %v1357
  %v1359 = vlaneseq
  %v1360 = vshrl.u32 %v1359, 7
  %v1361 = vsub.s32 %v1358, %v1360
  %v1362 = vrot.slane %v1355, %v1361
  %v1364 = vlaneseq
  %vm1365 = vcmp.ge.s32.totalorder %v1364, 0
  %vm1366 = vcmp.lt.s32.totalorder %v1364, 512
  %vm1367 = vmand %vm1365, %vm1366
  %1368 = vst.msk [vmem:[%s7] sm:$0xf] %vm1367, %v1362
  // Predicated region
  $region30: #{dnn_forward.1} parent=0 // pred_check
    _
  $region31: #{dnn_forward.1} parent=0 // pred_check_branch
    %1370 = sbr.rel (0) target = $region33
  $region32: #{dnn_forward.1} parent=0 // pred_region
    _
  $region33: #{dnn_forward.1} parent=0 // pred_fallthru
    _
  // Predicated region
  $region34: #{dnn_forward.1} parent=0 // pred_check
    _
  $region35: #{dnn_forward.1} parent=0 // pred_check_branch
    %1372 = sbr.rel (0) target = $region37
  $region36: #{dnn_forward.1} parent=0 // pred_region
    _
  $region37: #{dnn_forward.1} parent=0 // pred_fallthru
    _

</llo_original>
